<compile_context>
chip_gen: v7x
topology: tpu7x:2x2x1
jax: 0.10.0
libtpu: 0.0.40
codegen_flags: <defaults>
</compile_context>

<pallas_src>
import functools
import math

import jax
import jax.numpy as jnp
import numpy as np
from jax.experimental import pallas as pl
from jax.experimental.pallas import tpu as pltpu


def _sinusoidal_pos_emb_kernel(pos_ref, out_ref, *,
                               padding_idx: int, half_dim: int, odd: bool,
                               neg_scale: float):
    # pos_ref: (TILE, 1)  int32  -- positions, padding slots == padding_idx
    # out_ref: (TILE, D)  float32
    pos = pos_ref[...]                                            # (TILE, 1)
    maskf = (pos != padding_idx).astype(jnp.float32)              # (TILE, 1)

    # inv_freq recomputed per step: half_dim EUP exps, negligible vs sin/cos.
    freq_idx = jax.lax.broadcasted_iota(jnp.int32, (1, half_dim), 1)
    inv_freq = jnp.exp(freq_idx.astype(jnp.float32) * neg_scale)  # (1, half)

    angles = pos.astype(jnp.float32) * inv_freq                   # (TILE, half)

    # Direct slab stores (t2t layout: [sin | cos | (0)]), mask folded in.
    out_ref[:, :half_dim] = jnp.sin(angles) * maskf
    out_ref[:, half_dim:2 * half_dim] = jnp.cos(angles) * maskf
    if odd:
        out_ref[:, 2 * half_dim:] = jnp.zeros(
            (out_ref.shape[0], out_ref.shape[1] - 2 * half_dim), jnp.float32)


def _round_up(x: int, m: int) -> int:
    return ((x + m - 1) // m) * m


def sinusoidal_positional_embedding(ids, embedding_dim, padding_idx=0,
                                    left_pad=False):
    """ids: [bsz, seq_len] int array -> [bsz, seq_len, embedding_dim] float32."""
    ids = ids.astype(jnp.int32)
    bsz, seq_len = ids.shape
    half_dim = embedding_dim // 2
    odd = (embedding_dim % 2 == 1)

    # Same formula as get_embedding; guard half_dim == 1 (embedding_dim in
    # {2,3}) against div-by-zero -- the PyTorch reference shares that issue.
    neg_scale = -(math.log(10000.0) / max(half_dim - 1, 1))

    # --- positions: tiny [B,S] int32 bookkeeping in plain XLA (hoisted out of
    # the kernel so row-tiling is legal and no in-kernel row reduce). ---------
    mask = ids != padding_idx
    positions = jnp.broadcast_to(
        jnp.arange(padding_idx + 1, padding_idx + 1 + seq_len,
                   dtype=jnp.int32)[None, :],
        (bsz, seq_len))
    if left_pad:
        positions = positions - seq_len + jnp.sum(
            mask.astype(jnp.int32), axis=1, keepdims=True)
    pos = jnp.where(mask, positions, jnp.int32(padding_idx))       # (B, S)

    # --- row tiling over the flattened (B*S) axis: ~2 MiB output blocks,
    # balanced so the trailing pad is at most 7 rows in the common case. ------
    n = bsz * seq_len
    n8 = _round_up(n, 8)
    row_bytes = embedding_dim * 4
    target_rows = max(8, ((2 << 20) // max(row_bytes, 1)) // 8 * 8)
    num_tiles = max(1, -(-n8 // target_rows))          # ceil div (static ints)
    tile = _round_up(-(-n8 // num_tiles), 8)
    n_pad = tile * num_tiles

    pos_flat = pos.reshape(n)
    if n_pad > n:
        pos_flat = jnp.pad(pos_flat, (0, n_pad - n),
                           constant_values=padding_idx)
    pos2 = pos_flat.reshape(n_pad, 1)                               # (N_pad, 1)

    kernel = functools.partial(
        _sinusoidal_pos_emb_kernel,
        padding_idx=padding_idx, half_dim=half_dim, odd=odd,
        neg_scale=neg_scale)

    cost = pl.CostEstimate(
        flops=3 * n_pad * half_dim,                       # angle mul + 2 mask muls
        transcendentals=2 * n_pad * half_dim + num_tiles * half_dim,  # sin+cos+exp
        bytes_accessed=4 * n_pad * embedding_dim + 4 * n_pad)         # out + pos

    out = pl.pallas_call(
        kernel,
        out_shape=jax.ShapeDtypeStruct((n_pad, embedding_dim), jnp.float32),
        grid=(num_tiles,),
        in_specs=[
            # positions as a column (rows on sublanes) -> no relayout in kernel
            pl.BlockSpec((tile, 1), lambda i: (i, 0)),
        ],
        out_specs=pl.BlockSpec((tile, embedding_dim), lambda i: (i, 0)),
        compiler_params=pltpu.CompilerParams(
            dimension_semantics=("parallel",),
            vmem_limit_bytes=32 * 1024 * 1024),
        cost_estimate=cost,
    )(pos2)

    if n_pad > n:
        out = out[:n]
    return out.reshape(bsz, seq_len, embedding_dim)


def _reference(ids, embedding_dim, padding_idx=0, left_pad=False):
    """Pure-numpy reference mirroring the PyTorch module (table + gather)."""
    ids = np.asarray(ids)
    bsz, seq_len = ids.shape
    max_pos = padding_idx + 1 + seq_len
    half = embedding_dim // 2
    scale = math.log(10000.0) / max(half - 1, 1)
    inv_freq = np.exp(np.arange(half, dtype=np.float32) * -scale)
    ang = np.arange(max_pos, dtype=np.float32)[:, None] * inv_freq[None, :]
    table = np.concatenate([np.sin(ang), np.cos(ang)], axis=1)
    if embedding_dim % 2 == 1:
        table = np.concatenate([table, np.zeros((max_pos, 1), np.float32)], 1)
    table[padding_idx, :] = 0.0
    mask = ids != padding_idx
    pos = np.broadcast_to(
        np.arange(padding_idx + 1, padding_idx + 1 + seq_len), (bsz, seq_len)
    ).copy()
    if left_pad:
        pos = pos - seq_len + mask.sum(axis=1, keepdims=True)
    pos = np.where(mask, pos, padding_idx)
    return table[pos.reshape(-1)].reshape(bsz, seq_len, embedding_dim)


if __name__ == "__main__":
    key = jax.random.PRNGKey(0)
    bsz, seq_len, embedding_dim = 2, 8, 32
    padding_idx = 0

    # token ids in [1, 100); add right-side padding (= padding_idx) on row 1
    ids = jax.random.randint(key, (bsz, seq_len), 1, 100, dtype=jnp.int32)
    ids = ids.at[1, seq_len - 3:].set(padding_idx)

    # right-padding variant
    out = sinusoidal_positional_embedding(
        ids, embedding_dim, padding_idx=padding_idx, left_pad=False)
    out = jax.block_until_ready(out)
    ref = _reference(np.asarray(ids), embedding_dim,
                     padding_idx=padding_idx, left_pad=False)
    np.testing.assert_allclose(np.asarray(out), ref, rtol=1e-5, atol=1e-5)

    # left-padding variant
    ids_l = jnp.flip(ids, axis=1)
    out_l = sinusoidal_positional_embedding(
        ids_l, embedding_dim, padding_idx=padding_idx, left_pad=True)
    out_l = jax.block_until_ready(out_l)
    ref_l = _reference(np.asarray(ids_l), embedding_dim,
                       padding_idx=padding_idx, left_pad=True)
    np.testing.assert_allclose(np.asarray(out_l), ref_l, rtol=1e-5, atol=1e-5)

    print("KERNEL_OK")
</pallas_src>

<mosaic_0001>
module attributes {stable_mosaic.version = 11 : i64} {
  func.func @_sinusoidal_pos_emb_kernel(%arg0: i32, %arg1: memref<16x1xi32, #tpu.memory_space<vmem>>, %arg2: memref<16x32xf32, #tpu.memory_space<vmem>>) attributes {dimension_semantics = [#tpu.dimension_semantics<parallel>], iteration_bounds = array<i64: 1>, scalar_prefetch = 0 : i64, scratch_operands = 0 : i64, tpu.core_type = #tpu.core_type<tc>, window_params = [{transform_indices = @transform_0, window_bounds = array<i64: 16, 1>}, {transform_indices = @transform_1, window_bounds = array<i64: 16, 32>}]} {
    %c0 = arith.constant 0 : index
    %c0_0 = arith.constant 0 : index
    %0 = vector.load %arg1[%c0, %c0_0] : memref<16x1xi32, #tpu.memory_space<vmem>>, vector<16x1xi32>
    %c0_i32 = arith.constant 0 : i32
    %1 = vector.broadcast %c0_i32 : i32 to vector<16x1xi32>
    %2 = arith.cmpi ne, %0, %1 : vector<16x1xi32>
    %3 = arith.extui %2 : vector<16x1xi1> to vector<16x1xi32>
    %4 = arith.sitofp %3 : vector<16x1xi32> to vector<16x1xf32>
    %5 = tpu.iota {dimensions = array<i32: 1>} : vector<1x16xi32>
    %6 = arith.sitofp %5 : vector<1x16xi32> to vector<1x16xf32>
    %cst = arith.constant -0.614022672 : f32
    %7 = vector.broadcast %cst : f32 to vector<1x16xf32>
    %8 = arith.mulf %6, %7 : vector<1x16xf32>
    %9 = math.exp %8 : vector<1x16xf32>
    %10 = arith.sitofp %0 : vector<16x1xi32> to vector<16x1xf32>
    %11 = vector.broadcast %10 : vector<16x1xf32> to vector<16x16xf32>
    %12 = vector.broadcast %9 : vector<1x16xf32> to vector<16x16xf32>
    %13 = arith.mulf %11, %12 : vector<16x16xf32>
    %14 = math.sin %13 : vector<16x16xf32>
    %15 = vector.broadcast %4 : vector<16x1xf32> to vector<16x16xf32>
    %16 = arith.mulf %14, %15 : vector<16x16xf32>
    %c0_1 = arith.constant 0 : index
    %c0_2 = arith.constant 0 : index
    %17 = vector.load %arg2[%c0_1, %c0_2] : memref<16x32xf32, #tpu.memory_space<vmem>>, vector<16x16xf32>
    tpu.vector_store %arg2[%c0_1, %c0_2], %16 {strides = array<i32>} : memref<16x32xf32, #tpu.memory_space<vmem>>, vector<16x16xf32>,
    %18 = math.cos %13 : vector<16x16xf32>
    %19 = vector.broadcast %4 : vector<16x1xf32> to vector<16x16xf32>
    %20 = arith.mulf %18, %19 : vector<16x16xf32>
    %c0_3 = arith.constant 0 : index
    %c16 = arith.constant 16 : index
    %21 = vector.load %arg2[%c0_3, %c16] : memref<16x32xf32, #tpu.memory_space<vmem>>, vector<16x16xf32>
    tpu.vector_store %arg2[%c0_3, %c16], %20 {strides = array<i32>} : memref<16x32xf32, #tpu.memory_space<vmem>>, vector<16x16xf32>,
    return
  }
  func.func @transform_0(%arg0: i32) -> (i32, i32) {
    %c0_i32 = arith.constant 0 : i32
    %c0_i32_0 = arith.constant 0 : i32
    return %arg0, %c0_i32 : i32, i32
  }
  func.func @transform_1(%arg0: i32) -> (i32, i32) {
    %c0_i32 = arith.constant 0 : i32
    %c0_i32_0 = arith.constant 0 : i32
    return %arg0, %c0_i32 : i32, i32
  }
}

</mosaic_0001>

<llo_original>
// kernel: tpu_custom_call.1
$region0: #{tpu_custom_call.1}
  #allocation0 [shape = 'u32[]', space=smem, size = 0x4, offset = 0x4, fixed_abs, tag = 'smem constant byte address 0x4 - core index']
  #allocation1 [shape = 'u32[144,128]{1,0:T(1,128)}', space=vmem, size = 0x12000, scoped, tag = 'internal scratch']
  %s0 = inlined_call_operand.vmem [shape: s32[16,1], index: 0, kind: input, shape index: {}]
  %s1 = inlined_call_operand.hbm [shape: f32[16,32], index: 1, kind: output, shape index: {}]
  %s2 = sld [smem:[#allocation0]]
  $region14: #{tpu_custom_call.1} parent=0
    _
  %s4 = ssub.s32 1, %s2
  %s5 = scalar_select 0, %s4, %s2
  $region1: #{tpu_custom_call.1} parent=0
    #allocation2 [shape = 'u8[8192]{0}', space=vmem, size = 0x2000, scoped, tag = 'output window, operand 0, single buffered']
    #allocation3 [shape = 's32[1]{0}', space=sflag, size = 0x4, scoped, tag = 'scoped memory for tpu_custom_call.1']
    %6 = vsyncpa [#allocation3], 0
    // Predicated region
    $region2: #{tpu_custom_call.1} parent=1 // pred_check
      _
    $region3: #{tpu_custom_call.1} parent=1 // pred_check_branch
      %8 = sbr.rel (0) target = $region5
    $region4: #{tpu_custom_call.1} parent=1 // pred_region
      _
    $region5: #{tpu_custom_call.1} parent=1 // pred_fallthru
      _
    %v9 = vld [vmem:[%s0] sm:$0xff]
    %v10 = vld [vmem:[%s0 + $0x8] sm:$0xff]
    %vm11 = vcmp.ne.s32.totalorder %v9, 0
    %vm12 = vcmp.ne.s32.totalorder %v10, 0
    %v13 = vsel %vm11, 1, 0
    %v14 = vsel %vm12, 1, 0
    %v15 = vcvt.s32.f32 %v13
    %v16 = vcvt.s32.f32 %v14
    %v17 = vlaneseq
    %v18 = vand.u32 %v17, 127
    %v19 = vcvt.s32.f32 %v18
    %v20 = vmul.f32 %v19, -0.6140227
    %v21 = vmul.f32 %v20, 1.442695
    %v22 = vpow.pop %v21
    %v23 = vcvt.s32.f32 %v9
    %v24 = vcvt.s32.f32 %v10
    %26 = vset.pattern.permute.xlu0 0
    %27 = vperm.xlu0 %26, %v23
    %v28 = vpop.permute.xlu0 %27
    %31 = vset.pattern.permute.xlu0 0
    %32 = vperm.xlu0 %31, %v24
    %v33 = vpop.permute.xlu0 %32
    %v35 = vmul.f32 %v28, %v22
    %v36 = vmul.f32 %v33, %v22
    %v37 = vand.u32 2147483647, %v35
    %vm38 = vcmp.le.f32.partialorder %v37, 0.7853982
    %vm39 = vcmp.lt.s32.totalorder %v35, 0
    %v40 = vand.u32 %v35, 2139095040
    %v41 = vshrl.u32 %v40, 23
    %v42 = vsub.s32 %v41, 127
    %v43 = vand.u32 2147483647, %v35
    %v44 = vand.u32 %v43, 8388607
    %v45 = vor.u32 %v44, 8388608
    %v46 = vsub.s32 0, %v45
    %v47 = vadd.s32 %v42, 1
    %vm48 = vcmp.gt.s32.totalorder %v47, 0
    %v49 = vsel %vm48, %v47, 0
    %v50 = vshrl.u32 %v49, 5
    %v51 = vand.u32 %v49, 31
    %v52 = vsub.s32 32, %v51
    %v53 = vshrl.u32 683565275, %v52
    %v54 = vshll.u32 683565275, %v51
    %v55 = vshrl.u32 2475754826, %v52
    %v56 = vor.u32 %v54, %v55
    %v57 = vshll.u32 2475754826, %v51
    %v58 = vshrl.u32 2131351028, %v52
    %v59 = vor.u32 %v57, %v58
    %v60 = vshll.u32 2131351028, %v51
    %v61 = vshrl.u32 2102212464, %v52
    %v62 = vor.u32 %v60, %v61
    %v63 = vshll.u32 2102212464, %v51
    %v64 = vshrl.u32 920167782, %v52
    %v65 = vor.u32 %v63, %v64
    %v66 = vshll.u32 920167782, %v51
    %v67 = vshrl.u32 1326507024, %v52
    %v68 = vor.u32 %v66, %v67
    %vm69 = vcmp.lt.s32.totalorder %v50, 1
    %vm70 = vcmp.lt.s32.totalorder %v50, 2
    %vm71 = vcmp.lt.s32.totalorder %v50, 3
    %vm72 = vcmp.lt.s32.totalorder %v50, 4
    %v73 = vsel %vm69, %v53, %v56
    %v74 = vsel %vm72, %v62, 2102212464
    %v75 = vsel %vm71, %v59, %v74
    %v76 = vsel %vm70, %v73, %v75
    %v77 = vsel %vm69, %v56, %v59
    %v78 = vsel %vm72, %v65, 920167782
    %v79 = vsel %vm71, %v62, %v78
    %v80 = vsel %vm70, %v77, %v79
    %v81 = vsel %vm69, %v59, %v62
    %v82 = vsel %vm72, %v68, 1326507024
    %v83 = vsel %vm71, %v65, %v82
    %v84 = vsel %vm70, %v81, %v83
    %v85 = vshll.u32 %v45, 8
    %v86 = vmul.u32.u64.compose %v85, %v84
    %v87 = vextract.low.u32 %v86
    %v88 = vextract.high.u32 %v86
    %v89 = vmul.u32.u64.compose %v85, %v80
    %v90 = vextract.low.u32 %v89
    %v91 = vextract.high.u32 %v89
    %v92 = vmul.u32 %v85, %v76
    %v93 = vadd.s32 %v88, %v90
    %vm94 = vc.u32 %v88, %v90
    %v95 = vadd.s32 %v91, 1
    %v96 = vsel %vm94, %v95, %v91
    %v97 = vadd.s32 %v92, %v96
    %v98 = vadd.s32 %v97, 536870912
    %v99 = vshrl.u32 %v98, 30
    %v100 = vshll.u32 %v99, 30
    %v101 = vsub.s32 %v97, %v100
    %vm102 = vcmp.lt.s32.totalorder %v101, 0
    %v103 = vsub.s32 0, %v101
    %v104 = vsel %vm102, %v103, %v101
    %v105 = vclz %v104
    %v106 = vsub.s32 %v105, 2
    %vm107 = vcmp.gt.s32.totalorder 0, %v106
    %v108 = vsel %vm107, 0, %v106
    %v109 = vsub.s32 32, %v108
    %v110 = vshll.u32 %v101, %v108
    %v111 = vshrl.u32 %v93, %v109
    %v112 = vor.u32 %v110, %v111
    %v113 = vsub.s32 4294967266, %v108
    %v114 = vadd.s32 %v113, 127
    %v115 = vshll.u32 %v114, 23
    %v116 = vor.u32 4788187, %v115
    %v117 = vand.u32 2147483647, %v116
    %v119 = vcvt.s32.f32 %v112
    %v120 = vmul.f32 %v119, %v117
    %v121 = vxor.u32 %v120, 2147483648
    %v122 = vsel %vm39, %v121, %v120
    %v123 = vsub.s32 4, %v99
    %v124 = vsel %vm39, %v123, %v99
    %v125 = vsel %vm38, %v35, %v122
    %v126 = vsel %vm38, 0, %v124
    %v127 = vcosq.f32.pop %v125
    %v128 = vsinq.f32.pop %v125
    %vm129 = vweird.f32 %v35
    %v130 = vadd.s32 %v126, 3
    %v131 = vand.u32 %v130, 3
    %vm132 = vcmp.lt.s32.totalorder %v131, 2
    %vm133 = vcmp.eq.s32.totalorder %v131, 0
    %v134 = vxor.u32 %v128, 2147483648
    %v135 = vsel %vm133, %v127, %v134
    %vm136 = vcmp.eq.s32.totalorder %v131, 2
    %v137 = vxor.u32 %v127, 2147483648
    %v138 = vsel %vm136, %v137, %v128
    %v139 = vsel %vm132, %v135, %v138
    %v140 = vsel %vm129, nan, %v139
    %v141 = vand.u32 2147483647, %v36
    %vm142 = vcmp.le.f32.partialorder %v141, 0.7853982
    %vm143 = vcmp.lt.s32.totalorder %v36, 0
    %v144 = vand.u32 %v36, 2139095040
    %v145 = vshrl.u32 %v144, 23
    %v146 = vsub.s32 %v145, 127
    %v147 = vand.u32 2147483647, %v36
    %v148 = vand.u32 %v147, 8388607
    %v149 = vor.u32 %v148, 8388608
    %v150 = vsub.s32 0, %v149
    %v151 = vadd.s32 %v146, 1
    %vm152 = vcmp.gt.s32.totalorder %v151, 0
    %v153 = vsel %vm152, %v151, 0
    %v154 = vshrl.u32 %v153, 5
    %v155 = vand.u32 %v153, 31
    %v156 = vsub.s32 32, %v155
    %v157 = vshrl.u32 683565275, %v156
    %v158 = vshll.u32 683565275, %v155
    %v159 = vshrl.u32 2475754826, %v156
    %v160 = vor.u32 %v158, %v159
    %v161 = vshll.u32 2475754826, %v155
    %v162 = vshrl.u32 2131351028, %v156
    %v163 = vor.u32 %v161, %v162
    %v164 = vshll.u32 2131351028, %v155
    %v165 = vshrl.u32 2102212464, %v156
    %v166 = vor.u32 %v164, %v165
    %v167 = vshll.u32 2102212464, %v155
    %v168 = vshrl.u32 920167782, %v156
    %v169 = vor.u32 %v167, %v168
    %v170 = vshll.u32 920167782, %v155
    %v171 = vshrl.u32 1326507024, %v156
    %v172 = vor.u32 %v170, %v171
    %vm173 = vcmp.lt.s32.totalorder %v154, 1
    %vm174 = vcmp.lt.s32.totalorder %v154, 2
    %vm175 = vcmp.lt.s32.totalorder %v154, 3
    %vm176 = vcmp.lt.s32.totalorder %v154, 4
    %v177 = vsel %vm173, %v157, %v160
    %v178 = vsel %vm176, %v166, 2102212464
    %v179 = vsel %vm175, %v163, %v178
    %v180 = vsel %vm174, %v177, %v179
    %v181 = vsel %vm173, %v160, %v163
    %v182 = vsel %vm176, %v169, 920167782
    %v183 = vsel %vm175, %v166, %v182
    %v184 = vsel %vm174, %v181, %v183
    %v185 = vsel %vm173, %v163, %v166
    %v186 = vsel %vm176, %v172, 1326507024
    %v187 = vsel %vm175, %v169, %v186
    %v188 = vsel %vm174, %v185, %v187
    %v189 = vshll.u32 %v149, 8
    %v190 = vmul.u32.u64.compose %v189, %v188
    %v191 = vextract.low.u32 %v190
    %v192 = vextract.high.u32 %v190
    %v193 = vmul.u32.u64.compose %v189, %v184
    %v194 = vextract.low.u32 %v193
    %v195 = vextract.high.u32 %v193
    %v196 = vmul.u32 %v189, %v180
    %v197 = vadd.s32 %v192, %v194
    %vm198 = vc.u32 %v192, %v194
    %v199 = vadd.s32 %v195, 1
    %v200 = vsel %vm198, %v199, %v195
    %v201 = vadd.s32 %v196, %v200
    %v202 = vadd.s32 %v201, 536870912
    %v203 = vshrl.u32 %v202, 30
    %v204 = vshll.u32 %v203, 30
    %v205 = vsub.s32 %v201, %v204
    %vm206 = vcmp.lt.s32.totalorder %v205, 0
    %v207 = vsub.s32 0, %v205
    %v208 = vsel %vm206, %v207, %v205
    %v209 = vclz %v208
    %v210 = vsub.s32 %v209, 2
    %vm211 = vcmp.gt.s32.totalorder 0, %v210
    %v212 = vsel %vm211, 0, %v210
    %v213 = vsub.s32 32, %v212
    %v214 = vshll.u32 %v205, %v212
    %v215 = vshrl.u32 %v197, %v213
    %v216 = vor.u32 %v214, %v215
    %v217 = vsub.s32 4294967266, %v212
    %v218 = vadd.s32 %v217, 127
    %v219 = vshll.u32 %v218, 23
    %v220 = vor.u32 4788187, %v219
    %v221 = vand.u32 2147483647, %v220
    %v223 = vcvt.s32.f32 %v216
    %v224 = vmul.f32 %v223, %v221
    %v225 = vxor.u32 %v224, 2147483648
    %v226 = vsel %vm143, %v225, %v224
    %v227 = vsub.s32 4, %v203
    %v228 = vsel %vm143, %v227, %v203
    %v229 = vsel %vm142, %v36, %v226
    %v230 = vsel %vm142, 0, %v228
    %v231 = vcosq.f32.pop %v229
    %v232 = vsinq.f32.pop %v229
    %vm233 = vweird.f32 %v36
    %v234 = vadd.s32 %v230, 3
    %v235 = vand.u32 %v234, 3
    %vm236 = vcmp.lt.s32.totalorder %v235, 2
    %vm237 = vcmp.eq.s32.totalorder %v235, 0
    %v238 = vxor.u32 %v232, 2147483648
    %v239 = vsel %vm237, %v231, %v238
    %vm240 = vcmp.eq.s32.totalorder %v235, 2
    %v241 = vxor.u32 %v231, 2147483648
    %v242 = vsel %vm240, %v241, %v232
    %v243 = vsel %vm236, %v239, %v242
    %v244 = vsel %vm233, nan, %v243
    %246 = vset.pattern.permute.xlu0 0
    %247 = vperm.xlu0 %246, %v15
    %v248 = vpop.permute.xlu0 %247
    %251 = vset.pattern.permute.xlu0 0
    %252 = vperm.xlu0 %251, %v16
    %v253 = vpop.permute.xlu0 %252
    %v255 = vmul.f32 %v140, %v248
    %v256 = vmul.f32 %v244, %v253
    %vm257 = vcmask 130048
    %258 = vst.msk [vmem:[#allocation2] sm:$0xff] %vm257, %v255
    %259 = vst.msk [vmem:[#allocation2 + $0x8] sm:$0xff] %vm257, %v256
    %v260 = vand.u32 2147483647, %v35
    %vm261 = vcmp.le.f32.partialorder %v260, 0.7853982
    %vm262 = vcmp.lt.s32.totalorder %v35, 0
    %v263 = vand.u32 %v35, 2139095040
    %v264 = vshrl.u32 %v263, 23
    %v265 = vsub.s32 %v264, 127
    %v266 = vand.u32 2147483647, %v35
    %v267 = vand.u32 %v266, 8388607
    %v268 = vor.u32 %v267, 8388608
    %v269 = vsub.s32 0, %v268
    %v270 = vadd.s32 %v265, 1
    %vm271 = vcmp.gt.s32.totalorder %v270, 0
    %v272 = vsel %vm271, %v270, 0
    %v273 = vshrl.u32 %v272, 5
    %v274 = vand.u32 %v272, 31
    %v275 = vsub.s32 32, %v274
    %v276 = vshrl.u32 683565275, %v275
    %v277 = vshll.u32 683565275, %v274
    %v278 = vshrl.u32 2475754826, %v275
    %v279 = vor.u32 %v277, %v278
    %v280 = vshll.u32 2475754826, %v274
    %v281 = vshrl.u32 2131351028, %v275
    %v282 = vor.u32 %v280, %v281
    %v283 = vshll.u32 2131351028, %v274
    %v284 = vshrl.u32 2102212464, %v275
    %v285 = vor.u32 %v283, %v284
    %v286 = vshll.u32 2102212464, %v274
    %v287 = vshrl.u32 920167782, %v275
    %v288 = vor.u32 %v286, %v287
    %v289 = vshll.u32 920167782, %v274
    %v290 = vshrl.u32 1326507024, %v275
    %v291 = vor.u32 %v289, %v290
    %vm292 = vcmp.lt.s32.totalorder %v273, 1
    %vm293 = vcmp.lt.s32.totalorder %v273, 2
    %vm294 = vcmp.lt.s32.totalorder %v273, 3
    %vm295 = vcmp.lt.s32.totalorder %v273, 4
    %v296 = vsel %vm292, %v276, %v279
    %v297 = vsel %vm295, %v285, 2102212464
    %v298 = vsel %vm294, %v282, %v297
    %v299 = vsel %vm293, %v296, %v298
    %v300 = vsel %vm292, %v279, %v282
    %v301 = vsel %vm295, %v288, 920167782
    %v302 = vsel %vm294, %v285, %v301
    %v303 = vsel %vm293, %v300, %v302
    %v304 = vsel %vm292, %v282, %v285
    %v305 = vsel %vm295, %v291, 1326507024
    %v306 = vsel %vm294, %v288, %v305
    %v307 = vsel %vm293, %v304, %v306
    %v308 = vshll.u32 %v268, 8
    %v309 = vmul.u32.u64.compose %v308, %v307
    %v310 = vextract.low.u32 %v309
    %v311 = vextract.high.u32 %v309
    %v312 = vmul.u32.u64.compose %v308, %v303
    %v313 = vextract.low.u32 %v312
    %v314 = vextract.high.u32 %v312
    %v315 = vmul.u32 %v308, %v299
    %v316 = vadd.s32 %v311, %v313
    %vm317 = vc.u32 %v311, %v313
    %v318 = vadd.s32 %v314, 1
    %v319 = vsel %vm317, %v318, %v314
    %v320 = vadd.s32 %v315, %v319
    %v321 = vadd.s32 %v320, 536870912
    %v322 = vshrl.u32 %v321, 30
    %v323 = vshll.u32 %v322, 30
    %v324 = vsub.s32 %v320, %v323
    %vm325 = vcmp.lt.s32.totalorder %v324, 0
    %v326 = vsub.s32 0, %v324
    %v327 = vsel %vm325, %v326, %v324
    %v328 = vclz %v327
    %v329 = vsub.s32 %v328, 2
    %vm330 = vcmp.gt.s32.totalorder 0, %v329
    %v331 = vsel %vm330, 0, %v329
    %v332 = vsub.s32 32, %v331
    %v333 = vshll.u32 %v324, %v331
    %v334 = vshrl.u32 %v316, %v332
    %v335 = vor.u32 %v333, %v334
    %v336 = vsub.s32 4294967266, %v331
    %v337 = vadd.s32 %v336, 127
    %v338 = vshll.u32 %v337, 23
    %v339 = vor.u32 4788187, %v338
    %v340 = vand.u32 2147483647, %v339
    %v342 = vcvt.s32.f32 %v335
    %v343 = vmul.f32 %v342, %v340
    %v344 = vxor.u32 %v343, 2147483648
    %v345 = vsel %vm262, %v344, %v343
    %v346 = vsub.s32 4, %v322
    %v347 = vsel %vm262, %v346, %v322
    %v348 = vsel %vm261, %v35, %v345
    %v349 = vsel %vm261, 0, %v347
    %v350 = vcosq.f32.pop %v348
    %v351 = vsinq.f32.pop %v348
    %vm352 = vweird.f32 %v35
    %v353 = vand.u32 %v349, 3
    %vm354 = vcmp.lt.s32.totalorder %v353, 2
    %vm355 = vcmp.eq.s32.totalorder %v353, 0
    %v356 = vxor.u32 %v351, 2147483648
    %v357 = vsel %vm355, %v350, %v356
    %vm358 = vcmp.eq.s32.totalorder %v353, 2
    %v359 = vxor.u32 %v350, 2147483648
    %v360 = vsel %vm358, %v359, %v351
    %v361 = vsel %vm354, %v357, %v360
    %v362 = vsel %vm352, nan, %v361
    %v363 = vand.u32 2147483647, %v36
    %vm364 = vcmp.le.f32.partialorder %v363, 0.7853982
    %vm365 = vcmp.lt.s32.totalorder %v36, 0
    %v366 = vand.u32 %v36, 2139095040
    %v367 = vshrl.u32 %v366, 23
    %v368 = vsub.s32 %v367, 127
    %v369 = vand.u32 2147483647, %v36
    %v370 = vand.u32 %v369, 8388607
    %v371 = vor.u32 %v370, 8388608
    %v372 = vsub.s32 0, %v371
    %v373 = vadd.s32 %v368, 1
    %vm374 = vcmp.gt.s32.totalorder %v373, 0
    %v375 = vsel %vm374, %v373, 0
    %v376 = vshrl.u32 %v375, 5
    %v377 = vand.u32 %v375, 31
    %v378 = vsub.s32 32, %v377
    %v379 = vshrl.u32 683565275, %v378
    %v380 = vshll.u32 683565275, %v377
    %v381 = vshrl.u32 2475754826, %v378
    %v382 = vor.u32 %v380, %v381
    %v383 = vshll.u32 2475754826, %v377
    %v384 = vshrl.u32 2131351028, %v378
    %v385 = vor.u32 %v383, %v384
    %v386 = vshll.u32 2131351028, %v377
    %v387 = vshrl.u32 2102212464, %v378
    %v388 = vor.u32 %v386, %v387
    %v389 = vshll.u32 2102212464, %v377
    %v390 = vshrl.u32 920167782, %v378
    %v391 = vor.u32 %v389, %v390
    %v392 = vshll.u32 920167782, %v377
    %v393 = vshrl.u32 1326507024, %v378
    %v394 = vor.u32 %v392, %v393
    %vm395 = vcmp.lt.s32.totalorder %v376, 1
    %vm396 = vcmp.lt.s32.totalorder %v376, 2
    %vm397 = vcmp.lt.s32.totalorder %v376, 3
    %vm398 = vcmp.lt.s32.totalorder %v376, 4
    %v399 = vsel %vm395, %v379, %v382
    %v400 = vsel %vm398, %v388, 2102212464
    %v401 = vsel %vm397, %v385, %v400
    %v402 = vsel %vm396, %v399, %v401
    %v403 = vsel %vm395, %v382, %v385
    %v404 = vsel %vm398, %v391, 920167782
    %v405 = vsel %vm397, %v388, %v404
    %v406 = vsel %vm396, %v403, %v405
    %v407 = vsel %vm395, %v385, %v388
    %v408 = vsel %vm398, %v394, 1326507024
    %v409 = vsel %vm397, %v391, %v408
    %v410 = vsel %vm396, %v407, %v409
    %v411 = vshll.u32 %v371, 8
    %v412 = vmul.u32.u64.compose %v411, %v410
    %v413 = vextract.low.u32 %v412
    %v414 = vextract.high.u32 %v412
    %v415 = vmul.u32.u64.compose %v411, %v406
    %v416 = vextract.low.u32 %v415
    %v417 = vextract.high.u32 %v415
    %v418 = vmul.u32 %v411, %v402
    %v419 = vadd.s32 %v414, %v416
    %vm420 = vc.u32 %v414, %v416
    %v421 = vadd.s32 %v417, 1
    %v422 = vsel %vm420, %v421, %v417
    %v423 = vadd.s32 %v418, %v422
    %v424 = vadd.s32 %v423, 536870912
    %v425 = vshrl.u32 %v424, 30
    %v426 = vshll.u32 %v425, 30
    %v427 = vsub.s32 %v423, %v426
    %vm428 = vcmp.lt.s32.totalorder %v427, 0
    %v429 = vsub.s32 0, %v427
    %v430 = vsel %vm428, %v429, %v427
    %v431 = vclz %v430
    %v432 = vsub.s32 %v431, 2
    %vm433 = vcmp.gt.s32.totalorder 0, %v432
    %v434 = vsel %vm433, 0, %v432
    %v435 = vsub.s32 32, %v434
    %v436 = vshll.u32 %v427, %v434
    %v437 = vshrl.u32 %v419, %v435
    %v438 = vor.u32 %v436, %v437
    %v439 = vsub.s32 4294967266, %v434
    %v440 = vadd.s32 %v439, 127
    %v441 = vshll.u32 %v440, 23
    %v442 = vor.u32 4788187, %v441
    %v443 = vand.u32 2147483647, %v442
    %v445 = vcvt.s32.f32 %v438
    %v446 = vmul.f32 %v445, %v443
    %v447 = vxor.u32 %v446, 2147483648
    %v448 = vsel %vm365, %v447, %v446
    %v449 = vsub.s32 4, %v425
    %v450 = vsel %vm365, %v449, %v425
    %v451 = vsel %vm364, %v36, %v448
    %v452 = vsel %vm364, 0, %v450
    %v453 = vcosq.f32.pop %v451
    %v454 = vsinq.f32.pop %v451
    %vm455 = vweird.f32 %v36
    %v456 = vand.u32 %v452, 3
    %vm457 = vcmp.lt.s32.totalorder %v456, 2
    %vm458 = vcmp.eq.s32.totalorder %v456, 0
    %v459 = vxor.u32 %v454, 2147483648
    %v460 = vsel %vm458, %v453, %v459
    %vm461 = vcmp.eq.s32.totalorder %v456, 2
    %v462 = vxor.u32 %v453, 2147483648
    %v463 = vsel %vm461, %v462, %v454
    %v464 = vsel %vm457, %v460, %v463
    %v465 = vsel %vm455, nan, %v464
    %v466 = vmul.f32 %v362, %v248
    %v467 = vmul.f32 %v465, %v253
    %470 = vrot.lane.b32.xlu0 %v466, 16
    %v471 = vpop.permute.xlu0 %470
    %472 = vrot.lane.b32.xlu0 %v467, 16
    %v473 = vpop.permute.xlu0 %472
    %vm476 = vcmask 261248
    %477 = vst.msk [vmem:[#allocation2] sm:$0xff] %vm476, %v471
    %478 = vst.msk [vmem:[#allocation2 + $0x8] sm:$0xff] %vm476, %v473
    // Predicated region
    $region6: #{tpu_custom_call.1} parent=1 // pred_check
      _
    $region7: #{tpu_custom_call.1} parent=1 // pred_check_branch
      %480 = sbr.rel (0) target = $region9
    $region8: #{tpu_custom_call.1} parent=1 // pred_region
      %s482 = ssub.s32 256, 256
      %483 = vsyncadd [#allocation3], %s482
      %s484 = sshll.u32 [#allocation2], 4
      %s485 = int_to_ptr.vmem [resolvable:$true] %s484
      %490 = dma.vmem_to_hbm [thread:$0]  %s485, 256, %s1, [#allocation3], 128, 128, 8
    $region9: #{tpu_custom_call.1} parent=1 // pred_fallthru
      _
    // Predicated region
    $region10: #{tpu_custom_call.1} parent=1 // pred_check
      _
    $region11: #{tpu_custom_call.1} parent=1 // pred_check_branch
      %492 = sbr.rel (0) target = $region13
    $region12: #{tpu_custom_call.1} parent=1 // pred_region
      %493 = dma.done [#allocation3], 256
    $region13: #{tpu_custom_call.1} parent=1 // pred_fallthru
      _
    %494 = vsyncpa [#allocation3], 1

</llo_original>
